<compile_context>
chip_gen: v5e
topology: v5e:2x2
jax: 0.10.0
libtpu: 0.0.40
codegen_flags: <defaults>
</compile_context>

<pallas_src>
import functools

import jax
import jax.numpy as jnp
from jax.experimental import pallas as pl
from jax.experimental.pallas import tpu as pltpu

_LANE = 128
_TF_MAX = 2048   # features per reduction tile
_TB_MAX = 512    # batch rows per tile
_TC_MAX = 512    # classes per tile


def _cdiv(a, b):
    return -(-a // b)


def _round_up(x, m):
    return _cdiv(x, m) * m


def _nonlin(d, nonlinearity):
    if nonlinearity == "square":
        return d * d
    elif nonlinearity == "abs":
        return jnp.abs(d)
    elif nonlinearity is None:
        return d
    raise KeyError("Unknown nonlinearity:", nonlinearity)


@functools.lru_cache(maxsize=None)
def _vmem_limit_bytes():
    # ~3/4 of physical VMEM: ~96 MiB on v5e/v6e (128 MiB), ~48 MiB on v7x (64 MiB).
    try:
        phys = pltpu.get_tpu_info().vmem_capacity_bytes
    except Exception:
        phys = 64 * 1024 * 1024          # v7x-safe fallback
    return int(min(phys * 3 // 4, 100 * 1024 * 1024))


def _choose_tf(F):
    # Single full-width F block when it fits (also sidesteps ragged masking);
    # otherwise a lane-aligned 2048-wide reduction tile.
    return F if F <= _TF_MAX else _TF_MAX


def _choose_tb(B):
    if B < 64:
        return B                          # one block; block dim == full array dim
    # >= 2 B blocks so the "parallel" axis can be split across v7x's 2 TensorCores.
    return min(_TB_MAX, _round_up(_cdiv(B, 2), 8))


# ----------------------------------------------------------------------------
# Kernels
# ----------------------------------------------------------------------------
def _classifier_kernel(x1_ref, x2_ref, w_ref, b_ref, out_ref, acc_ref, *,
                       nonlinearity, f_total, tf, ragged_f):
    # grid = (B tiles, C tiles, F tiles); F (axis 2) is the reduction axis.
    k = pl.program_id(2)

    @pl.when(k == 0)
    def _():
        acc_ref[...] = jnp.zeros_like(acc_ref)

    d = x1_ref[...].astype(jnp.float32) - x2_ref[...].astype(jnp.float32)
    d = _nonlin(d, nonlinearity)
    if ragged_f:
        # NaN-safe zeroing of out-of-bounds feature columns of the last F tile.
        col = jax.lax.broadcasted_iota(jnp.int32, d.shape, 1) + k * tf
        d = jnp.where(col < f_total, d, 0.0)
    acc_ref[...] += jnp.dot(d.astype(w_ref.dtype), w_ref[...],
                            preferred_element_type=jnp.float32)

    @pl.when(k == pl.num_programs(2) - 1)
    def _():
        out_ref[...] = acc_ref[...] + b_ref[...]


def _sum_kernel(*refs, nonlinearity, shift_sum, f_total, tf, ragged_f, has_scale):
    # grid = (B tiles, F tiles); F (axis 1) is the reduction axis.
    if has_scale:
        x1_ref, x2_ref, s_ref, out_ref, acc_ref = refs
    else:
        x1_ref, x2_ref, out_ref, acc_ref = refs
        s_ref = None
    k = pl.program_id(1)

    @pl.when(k == 0)
    def _():
        acc_ref[...] = jnp.zeros_like(acc_ref)

    d = x1_ref[...].astype(jnp.float32) - x2_ref[...].astype(jnp.float32)
    d = _nonlin(d, nonlinearity)
    if ragged_f:
        col = jax.lax.broadcasted_iota(jnp.int32, d.shape, 1) + k * tf
        d = jnp.where(col < f_total, d, 0.0)
    if has_scale:
        d = d * s_ref[...]                 # per-feature BN scale (VPU)

    # VPU accumulation of lane-aligned 128-wide chunks into a (TB,128)
    # per-lane partial-sum accumulator (keeps the MXU idle, XLU only at end).
    partial = acc_ref[...]
    n_full = (tf // _LANE) * _LANE
    for g in range(0, n_full, _LANE):
        partial = partial + d[:, g:g + _LANE]
    if n_full < tf:                        # ragged tail (< 128 features)
        tail = jnp.sum(d[:, n_full:tf], axis=-1, keepdims=True)      # (TB, 1)
        lane = jax.lax.broadcasted_iota(jnp.int32, partial.shape, 1)
        partial = partial + jnp.where(lane == 0, tail, 0.0)
    acc_ref[...] = partial

    @pl.when(k == pl.num_programs(1) - 1)
    def _():
        row = jnp.sum(acc_ref[...], axis=-1, keepdims=True) + shift_sum  # (TB,1)
        out_ref[...] = jnp.broadcast_to(row, out_ref.shape)   # lane-dense store


# ----------------------------------------------------------------------------
# Jitted hot paths (everything else is one-time __init__ prep)
# ----------------------------------------------------------------------------
@functools.partial(
    jax.jit,
    static_argnames=("nonlinearity", "tb", "tf", "tc", "n_features",
                     "n_classes", "vmem_limit"))
def _classifier_forward(x1, x2, w, b, *, nonlinearity, tb, tf, tc,
                        n_features, n_classes, vmem_limit):
    B = x1.shape[0]
    F_pad, C_pad = w.shape
    nb, nc, nk = _cdiv(B, tb), C_pad // tc, F_pad // tf
    ragged_f = F_pad != n_features

    kernel = functools.partial(_classifier_kernel, nonlinearity=nonlinearity,
                               f_total=n_features, tf=tf, ragged_f=ragged_f)
    cost = pl.CostEstimate(
        flops=int(2 * B * F_pad * C_pad + 2 * B * n_features),
        transcendentals=0,
        bytes_accessed=int((x1.dtype.itemsize + x2.dtype.itemsize) * B * n_features
                           + w.dtype.itemsize * F_pad * C_pad * nb
                           + 4 * B * C_pad))

    out = pl.pallas_call(
        kernel,
        grid=(nb, nc, nk),
        in_specs=[
            pl.BlockSpec((tb, tf), lambda i, j, k: (i, k)),
            pl.BlockSpec((tb, tf), lambda i, j, k: (i, k)),
            pl.BlockSpec((tf, tc), lambda i, j, k: (k, j)),
            pl.BlockSpec((1, tc), lambda i, j, k: (0, j)),
        ],
        out_specs=pl.BlockSpec((tb, tc), lambda i, j, k: (i, j)),
        out_shape=jax.ShapeDtypeStruct((B, C_pad), jnp.float32),
        scratch_shapes=[pltpu.VMEM((tb, tc), jnp.float32)],
        compiler_params=pltpu.CompilerParams(
            dimension_semantics=("parallel", "parallel", "arbitrary"),
            vmem_limit_bytes=vmem_limit),
        cost_estimate=cost,
    )(x1, x2, w, b)
    return out[:, :n_classes]


@functools.partial(
    jax.jit,
    static_argnames=("nonlinearity", "shift_sum", "tb", "tf", "vmem_limit"))
def _sum_forward(x1, x2, s, *, nonlinearity, shift_sum, tb, tf, vmem_limit):
    B, F = x1.shape
    nb, nk = _cdiv(B, tb), _cdiv(F, tf)
    ragged_f = (F % tf) != 0
    has_scale = s is not None

    kernel = functools.partial(_sum_kernel, nonlinearity=nonlinearity,
                               shift_sum=shift_sum, f_total=F, tf=tf,
                               ragged_f=ragged_f, has_scale=has_scale)

    in_specs = [pl.BlockSpec((tb, tf), lambda i, k: (i, k)),
                pl.BlockSpec((tb, tf), lambda i, k: (i, k))]
    operands = [x1, x2]
    if has_scale:
        in_specs.append(pl.BlockSpec((1, tf), lambda i, k: (0, k)))
        operands.append(s)

    cost = pl.CostEstimate(
        flops=int(4 * B * F),
        transcendentals=0,
        bytes_accessed=int((x1.dtype.itemsize + x2.dtype.itemsize) * B * F
                           + 4 * B * _LANE))

    out = pl.pallas_call(
        kernel,
        grid=(nb, nk),
        in_specs=in_specs,
        out_specs=pl.BlockSpec((tb, _LANE), lambda i, k: (i, 0)),
        out_shape=jax.ShapeDtypeStruct((B, _LANE), jnp.float32),
        scratch_shapes=[pltpu.VMEM((tb, _LANE), jnp.float32)],
        compiler_params=pltpu.CompilerParams(
            dimension_semantics=("parallel", "arbitrary"),
            vmem_limit_bytes=vmem_limit),
        cost_estimate=cost,
    )(*operands)
    return out[:, 0]                       # matches torch x.sum(1) -> (B,)


# ----------------------------------------------------------------------------
# Module wrapper
# ----------------------------------------------------------------------------
class EltwiseSubEmbed:
    def __init__(self, nonlinearity="square", use_batch_norm=False,
                 use_classifier=False, num_features=0, num_classes=0,
                 key=None, mxu_dtype=jnp.bfloat16):
        if nonlinearity is not None and nonlinearity not in ["square", "abs"]:
            raise KeyError("Unknown nonlinearity:", nonlinearity)
        self.nonlinearity = nonlinearity
        self.use_batch_norm = use_batch_norm
        self.use_classifier = use_classifier
        self.num_features = num_features
        self.num_classes = num_classes
        key = jax.random.PRNGKey(0) if key is None else key

        if use_batch_norm:
            # nn.BatchNorm1d(num_features): weight=1, bias=0, running_mean=0,
            # running_var=1, eps=1e-5 (eval-mode semantics).
            gamma = jnp.ones((num_features,), jnp.float32)
            beta = jnp.zeros((num_features,), jnp.float32)
            running_mean = jnp.zeros((num_features,), jnp.float32)
            running_var = jnp.ones((num_features,), jnp.float32)
            eps = 1e-5
            self.bn_scale = gamma / jnp.sqrt(running_var + eps)       # (F,)
            self.bn_shift = beta - running_mean * self.bn_scale       # (F,)
        else:
            self.bn_scale = None
            self.bn_shift = None

        if use_classifier:
            assert num_features > 0 and num_classes > 0
            # Linear(num_features, num_classes): W ~ N(0, 0.001), b = 0
            w = 0.001 * jax.random.normal(
                key, (num_classes, num_features), jnp.float32)
            bias = jnp.zeros((num_classes,), jnp.float32)
            self._ref_w_t = w.T                                       # (F, C)
            self._ref_bias = bias
            if use_batch_norm:
                # Fold eval-mode BN into the linear layer (exact algebra):
                #   (d*scale + shift) @ W.T + b
                #   == d @ (scale[:,None]*W.T) + (shift @ W.T + b)
                w_eff = self.bn_scale[:, None] * w.T                  # (F, C)
                b_eff = self.bn_shift @ w.T + bias                    # (C,)
            else:
                w_eff, b_eff = w.T, bias
            # One-time padding: zero rows for any ragged F tile (NaN-safe with
            # the in-kernel column mask), lane-dense C, MXU dtype (bf16 default).
            F, C = num_features, num_classes
            tf = _choose_tf(F)
            F_pad = _round_up(F, tf)
            C_pad = _round_up(C, _LANE) if C <= _TC_MAX else _round_up(C, _TC_MAX)
            self._tf_cls = tf
            self._tc = min(C_pad, _TC_MAX)
            self._w_pad = jnp.pad(
                w_eff, ((0, F_pad - F), (0, C_pad - C))).astype(mxu_dtype)
            self._b_pad = jnp.pad(
                b_eff, (0, C_pad - C)).reshape(1, C_pad).astype(jnp.float32)
        elif use_batch_norm:
            # Sum path with BN: per-feature scale + scalar shift-sum, padded once.
            F = num_features
            tf = _choose_tf(F)
            F_pad = _round_up(F, tf)
            self._tf_sum = tf
            self._s_pad = jnp.pad(
                self.bn_scale, (0, F_pad - F)).reshape(1, F_pad)
            self._shift_sum = float(jnp.sum(self.bn_shift))   # host sync: init only

    def __call__(self, x1, x2):
        # NOTE: output is float32 (accumulation dtype), regardless of input dtype.
        assert x1.shape == x2.shape and x1.ndim == 2
        B, F = x1.shape
        if self.use_batch_norm or self.use_classifier:
            assert F == self.num_features
        tb = _choose_tb(B)
        vmem = _vmem_limit_bytes()

        if self.use_classifier:
            return _classifier_forward(
                x1, x2, self._w_pad, self._b_pad,
                nonlinearity=self.nonlinearity, tb=tb, tf=self._tf_cls,
                tc=self._tc, n_features=self.num_features,
                n_classes=self.num_classes, vmem_limit=vmem)

        if self.use_batch_norm:
            return _sum_forward(
                x1, x2, self._s_pad, nonlinearity=self.nonlinearity,
                shift_sum=self._shift_sum, tb=tb, tf=self._tf_sum,
                vmem_limit=vmem)

        return _sum_forward(
            x1, x2, None, nonlinearity=self.nonlinearity, shift_sum=0.0,
            tb=tb, tf=_choose_tf(F), vmem_limit=vmem)


# ----------------------------------------------------------------------------
# Pure-JAX reference for verification (original, unfolded f32 semantics)
# ----------------------------------------------------------------------------
def _reference(mod, x1, x2):
    x = x1 - x2
    if mod.nonlinearity == "square":
        x = x * x
    elif mod.nonlinearity == "abs":
        x = jnp.abs(x)
    if mod.use_batch_norm:
        x = x * mod.bn_scale[None, :] + mod.bn_shift[None, :]
    if mod.use_classifier:
        return x @ mod._ref_w_t + mod._ref_bias[None, :]
    return x.sum(1)


if __name__ == "__main__":
    key = jax.random.PRNGKey(0)
    k1, k2, k3, k4, k5, k6, kw = jax.random.split(key, 7)

    # Config 1: square + BN + classifier (typical reid siamese head), bf16 MXU.
    B, F, C = 8, 128, 16
    x1 = jax.random.normal(k1, (B, F), jnp.float32)
    x2 = jax.random.normal(k2, (B, F), jnp.float32)
    m1 = EltwiseSubEmbed(nonlinearity="square", use_batch_norm=True,
                         use_classifier=True, num_features=F, num_classes=C,
                         key=kw)
    out1 = jax.block_until_ready(m1(x1, x2))
    ref1 = _reference(m1, x1, x2)
    assert out1.shape == (B, C)
    assert jnp.allclose(out1, ref1, atol=1e-2, rtol=5e-2), "classifier bf16 path"

    # Config 2: default module (square, no BN, no classifier) -> sum over dim 1.
    m2 = EltwiseSubEmbed(nonlinearity="square")
    out2 = jax.block_until_ready(m2(x1, x2))
    ref2 = _reference(m2, x1, x2)
    assert out2.shape == (B,)
    assert jnp.allclose(out2, ref2, atol=1e-3, rtol=1e-4), "sum path"

    # Config 3: abs + BN, non-aligned shapes (B=10, F=200).
    B3, F3 = 10, 200
    x1b = jax.random.normal(k3, (B3, F3), jnp.float32)
    x2b = jax.random.normal(k4, (B3, F3), jnp.float32)
    m3 = EltwiseSubEmbed(nonlinearity="abs", use_batch_norm=True,
                         use_classifier=False, num_features=F3)
    out3 = jax.block_until_ready(m3(x1b, x2b))
    ref3 = _reference(m3, x1b, x2b)
    assert out3.shape == (B3,)
    assert jnp.allclose(out3, ref3, atol=1e-3, rtol=1e-4), "abs+bn sum path"

    # Config 4: classifier in f32 (tight tolerance), non-aligned F and C.
    m4 = EltwiseSubEmbed(nonlinearity="square", use_batch_norm=True,
                         use_classifier=True, num_features=F3, num_classes=10,
                         key=kw, mxu_dtype=jnp.float32)
    out4 = jax.block_until_ready(m4(x1b, x2b))
    ref4 = _reference(m4, x1b, x2b)
    assert out4.shape == (B3, 10)
    assert jnp.allclose(out4, ref4, atol=1e-4, rtol=1e-4), "classifier f32 path"

    # Config 5: F > TF_MAX -> ragged last reduction tile (classifier, bf16).
    B5, F5, C5 = 8, 2100, 12
    x1c = jax.random.normal(k5, (B5, F5), jnp.float32)
    x2c = jax.random.normal(k6, (B5, F5), jnp.float32)
    m5 = EltwiseSubEmbed(nonlinearity="square", use_batch_norm=True,
                         use_classifier=True, num_features=F5, num_classes=C5,
                         key=kw)
    out5 = jax.block_until_ready(m5(x1c, x2c))
    ref5 = _reference(m5, x1c, x2c)
    assert out5.shape == (B5, C5)
    assert jnp.allclose(out5, ref5, atol=2e-2, rtol=5e-2), "ragged-F classifier"

    # Config 6: F > TF_MAX, no BN, ragged B with >= 2 B blocks (megacore path).
    B6, F6 = 70, 2100
    x1d = jax.random.normal(k5, (B6, F6), jnp.float32)
    x2d = jax.random.normal(k6, (B6, F6), jnp.float32)
    m6 = EltwiseSubEmbed(nonlinearity="abs")
    out6 = jax.block_until_ready(m6(x1d, x2d))
    ref6 = _reference(m6, x1d, x2d)
    assert out6.shape == (B6,)
    assert jnp.allclose(out6, ref6, atol=1e-2, rtol=1e-5), "ragged multi-tile sum"

    print("KERNEL_OK")
</pallas_src>

<mosaic_0001>
module attributes {stable_mosaic.version = 11 : i64} {
  func.func @_classifier_kernel(%arg0: i32, %arg1: i32, %arg2: i32, %arg3: memref<8x128xf32, #tpu.memory_space<vmem>>, %arg4: memref<8x128xf32, #tpu.memory_space<vmem>>, %arg5: memref<128x128xbf16, #tpu.memory_space<vmem>>, %arg6: memref<1x128xf32, #tpu.memory_space<vmem>>, %arg7: memref<8x128xf32, #tpu.memory_space<vmem>>, %arg8: memref<8x128xf32, #tpu.memory_space<vmem>>) attributes {dimension_semantics = [#tpu.dimension_semantics<parallel>, #tpu.dimension_semantics<parallel>, #tpu.dimension_semantics<arbitrary>], iteration_bounds = array<i64: 1, 1, 1>, scalar_prefetch = 0 : i64, scratch_operands = 1 : i64, tpu.core_type = #tpu.core_type<tc>, window_params = [{transform_indices = @transform_0, window_bounds = array<i64: 8, 128>}, {transform_indices = @transform_1, window_bounds = array<i64: 8, 128>}, {transform_indices = @transform_2, window_bounds = array<i64: 128, 128>}, {transform_indices = @transform_3, window_bounds = array<i64: 1, 128>}, {transform_indices = @transform_4, window_bounds = array<i64: 8, 128>}]} {
    %c0_i32 = arith.constant 0 : i32
    %0 = arith.cmpi eq, %arg2, %c0_i32 : i32
    %1 = arith.extui %0 : i1 to i32
    %c0_i32_0 = arith.constant 0 : i32
    %2 = arith.cmpi ne, %1, %c0_i32_0 : i32
    scf.if %2 {
      %cst_12 = arith.constant 0.000000e+00 : f32
      %16 = vector.broadcast %cst_12 : f32 to vector<8x128xf32>
      %c0_13 = arith.constant 0 : index
      %c0_14 = arith.constant 0 : index
      %17 = vector.load %arg8[%c0_13, %c0_14] : memref<8x128xf32, #tpu.memory_space<vmem>>, vector<8x128xf32>
      tpu.vector_store %arg8[%c0_13, %c0_14], %16 {strides = array<i32>} : memref<8x128xf32, #tpu.memory_space<vmem>>, vector<8x128xf32>,
    } else {
    }
    %c0 = arith.constant 0 : index
    %c0_1 = arith.constant 0 : index
    %3 = vector.load %arg3[%c0, %c0_1] : memref<8x128xf32, #tpu.memory_space<vmem>>, vector<8x128xf32>
    %c0_2 = arith.constant 0 : index
    %c0_3 = arith.constant 0 : index
    %4 = vector.load %arg4[%c0_2, %c0_3] : memref<8x128xf32, #tpu.memory_space<vmem>>, vector<8x128xf32>
    %5 = arith.subf %3, %4 : vector<8x128xf32>
    %6 = arith.mulf %5, %5 : vector<8x128xf32>
    %c0_4 = arith.constant 0 : index
    %c0_5 = arith.constant 0 : index
    %7 = vector.load %arg8[%c0_4, %c0_5] : memref<8x128xf32, #tpu.memory_space<vmem>>, vector<8x128xf32>
    %8 = arith.truncf %6 : vector<8x128xf32> to vector<8x128xbf16>
    %c0_6 = arith.constant 0 : index
    %c0_7 = arith.constant 0 : index
    %9 = vector.load %arg5[%c0_6, %c0_7] : memref<128x128xbf16, #tpu.memory_space<vmem>>, vector<128x128xbf16>
    %cst = arith.constant dense<0.000000e+00> : vector<8x128xf32>
    %10 = tpu.matmul %8, %9, %cst {dimension_numbers = #tpu.dot_dimension_numbers<[1], [0], [0], [1], [0, 0, 1, 1], [], []>} : vector<8x128xbf16>, vector<128x128xbf16>, vector<8x128xf32> -> vector<8x128xf32>
    %11 = arith.addf %7, %10 : vector<8x128xf32>
    %c0_8 = arith.constant 0 : index
    %c0_9 = arith.constant 0 : index
    %12 = vector.load %arg8[%c0_8, %c0_9] : memref<8x128xf32, #tpu.memory_space<vmem>>, vector<8x128xf32>
    tpu.vector_store %arg8[%c0_8, %c0_9], %11 {strides = array<i32>} : memref<8x128xf32, #tpu.memory_space<vmem>>, vector<8x128xf32>,
    %c0_i32_10 = arith.constant 0 : i32
    %13 = arith.cmpi eq, %arg2, %c0_i32_10 : i32
    %14 = arith.extui %13 : i1 to i32
    %c0_i32_11 = arith.constant 0 : i32
    %15 = arith.cmpi ne, %14, %c0_i32_11 : i32
    scf.if %15 {
      %c0_12 = arith.constant 0 : index
      %c0_13 = arith.constant 0 : index
      %16 = vector.load %arg8[%c0_12, %c0_13] : memref<8x128xf32, #tpu.memory_space<vmem>>, vector<8x128xf32>
      %c0_14 = arith.constant 0 : index
      %c0_15 = arith.constant 0 : index
      %17 = vector.load %arg6[%c0_14, %c0_15] : memref<1x128xf32, #tpu.memory_space<vmem>>, vector<1x128xf32>
      %18 = vector.broadcast %17 : vector<1x128xf32> to vector<8x128xf32>
      %19 = arith.addf %16, %18 : vector<8x128xf32>
      %c0_16 = arith.constant 0 : index
      %c0_17 = arith.constant 0 : index
      %20 = vector.load %arg7[%c0_16, %c0_17] : memref<8x128xf32, #tpu.memory_space<vmem>>, vector<8x128xf32>
      tpu.vector_store %arg7[%c0_16, %c0_17], %19 {strides = array<i32>} : memref<8x128xf32, #tpu.memory_space<vmem>>, vector<8x128xf32>,
    } else {
    }
    return
  }
  func.func @transform_0(%arg0: i32, %arg1: i32, %arg2: i32) -> (i32, i32) {
    %c0_i32 = arith.constant 0 : i32
    return %arg0, %arg2 : i32, i32
  }
  func.func @transform_1(%arg0: i32, %arg1: i32, %arg2: i32) -> (i32, i32) {
    %c0_i32 = arith.constant 0 : i32
    return %arg0, %arg2 : i32, i32
  }
  func.func @transform_2(%arg0: i32, %arg1: i32, %arg2: i32) -> (i32, i32) {
    %c0_i32 = arith.constant 0 : i32
    return %arg2, %arg1 : i32, i32
  }
  func.func @transform_3(%arg0: i32, %arg1: i32, %arg2: i32) -> (i32, i32) {
    %c0_i32 = arith.constant 0 : i32
    %c0_i32_0 = arith.constant 0 : i32
    return %c0_i32, %arg1 : i32, i32
  }
  func.func @transform_4(%arg0: i32, %arg1: i32, %arg2: i32) -> (i32, i32) {
    %c0_i32 = arith.constant 0 : i32
    return %arg0, %arg1 : i32, i32
  }
}

</mosaic_0001>

<llo_original>
// kernel: _classifier_forward.1
$region0: #{_classifier_forward.1}
  #allocation0 [shape = 'u32[]', space=smem, size = 0x4, offset = 0x4, fixed_abs, tag = 'smem constant byte address 0x4 - core index']
  #allocation1 [shape = 'u32[72,128]{1,0:T(1,128)}', space=vmem, size = 0x9000, scoped, tag = 'internal scratch']
  #allocation2 [shape = 'f32[8,128]{1,0:T(8,128)}', space=vmem, size = 0x1000, scoped, tag = 'scratch operand']
  %s0 = inlined_call_operand.hbm [shape: f32[8,128], index: 0, kind: input, shape index: {}]
  %s1 = inlined_call_operand.hbm [shape: f32[8,128], index: 1, kind: input, shape index: {}]
  %s2 = inlined_call_operand.hbm [shape: bf16[128,128], index: 2, kind: input, shape index: {}]
  %s3 = inlined_call_operand.vmem [shape: f32[1,128], index: 3, kind: input, shape index: {}]
  %s4 = inlined_call_operand.hbm [shape: f32[8,128], index: 4, kind: output, shape index: {}]
  %s5 = sld [smem:[#allocation0]]
  $region46: #{_classifier_forward.1} parent=0
    _
  %s7 = ssub.s32 1, %s5
  %s8 = scalar_select 0, %s7, %s5
  $region1: #{_classifier_forward.1} parent=0
    #allocation3 [shape = 'u8[4096]{0}', space=vmem, size = 0x1000, scoped, tag = 'input window, operand 0, single buffered']
    #allocation4 [shape = 's32[1]{0}', space=sflag, size = 0x4, scoped, tag = 'scoped memory for _classifier_forward.1']
    #allocation5 [shape = 's32[1]{0}', space=sflag, size = 0x4, scoped, tag = 'scoped memory for _classifier_forward.1']
    #allocation6 [shape = 'u8[4096]{0}', space=vmem, size = 0x1000, scoped, tag = 'input window, operand 1, single buffered']
    #allocation7 [shape = 's32[1]{0}', space=sflag, size = 0x4, scoped, tag = 'scoped memory for _classifier_forward.1']
    #allocation8 [shape = 'u8[32768]{0}', space=vmem, size = 0x8000, scoped, tag = 'input window, operand 2, single buffered']
    #allocation9 [shape = 'u8[4096]{0}', space=vmem, size = 0x1000, scoped, tag = 'output window, operand 0, single buffered']
    %9 = vsyncpa [#allocation4], 0
    %10 = vsyncpa [#allocation7], 0
    %11 = vsyncpa [#allocation5], 0
    // Predicated region
    $region2: #{_classifier_forward.1} parent=1 // pred_check
      _
    $region3: #{_classifier_forward.1} parent=1 // pred_check_branch
      %13 = sbr.rel (0) target = $region5
    $region4: #{_classifier_forward.1} parent=1 // pred_region
      %15 = vsyncadd [#allocation4], 0
      %s17 = sshll.u32 %s0, 4
      %s18 = int_to_ptr.hbm [resolvable:$true] %s17
      %s19 = sshll.u32 [#allocation3], 4
      %s20 = int_to_ptr.vmem [resolvable:$true] %s19
      %22 = dma.hbm_to_vmem [thread:$0]  %s18, 128, %s20, [#allocation4]
    $region5: #{_classifier_forward.1} parent=1 // pred_fallthru
      _
    // Predicated region
    $region6: #{_classifier_forward.1} parent=1 // pred_check
      _
    $region7: #{_classifier_forward.1} parent=1 // pred_check_branch
      %24 = sbr.rel (0) target = $region9
    $region8: #{_classifier_forward.1} parent=1 // pred_region
      %26 = vsyncadd [#allocation7], 0
      %s28 = sshll.u32 %s1, 4
      %s29 = int_to_ptr.hbm [resolvable:$true] %s28
      %s30 = sshll.u32 [#allocation6], 4
      %s31 = int_to_ptr.vmem [resolvable:$true] %s30
      %33 = dma.hbm_to_vmem [thread:$0]  %s29, 128, %s31, [#allocation7]
    $region9: #{_classifier_forward.1} parent=1 // pred_fallthru
      _
    // Predicated region
    $region10: #{_classifier_forward.1} parent=1 // pred_check
      _
    $region11: #{_classifier_forward.1} parent=1 // pred_check_branch
      %35 = sbr.rel (0) target = $region13
    $region12: #{_classifier_forward.1} parent=1 // pred_region
      %37 = vsyncadd [#allocation7], 0
      %s38 = sshll.u32 %s2, 4
      %s39 = int_to_ptr.hbm [resolvable:$true] %s38
      %s40 = sshll.u32 [#allocation8], 4
      %s41 = int_to_ptr.vmem [resolvable:$true] %s40
      %46 = dma.hbm_to_vmem [thread:$0]  %s39, 1024, %s41, [#allocation7], 64, 64, 4
    $region13: #{_classifier_forward.1} parent=1 // pred_fallthru
      _
    // Predicated region
    $region14: #{_classifier_forward.1} parent=1 // pred_check
      _
    $region15: #{_classifier_forward.1} parent=1 // pred_check_branch
      %48 = sbr.rel (0) target = $region17
    $region16: #{_classifier_forward.1} parent=1 // pred_region
      _
    $region17: #{_classifier_forward.1} parent=1 // pred_fallthru
      _
    // Predicated region
    $region18: #{_classifier_forward.1} parent=1 // pred_check
      _
    $region19: #{_classifier_forward.1} parent=1 // pred_check_branch
      %50 = sbr.rel (0) target = $region21
    $region20: #{_classifier_forward.1} parent=1 // pred_region
      %52 = dma.done [#allocation4], 128
    $region21: #{_classifier_forward.1} parent=1 // pred_fallthru
      _
    // Predicated region
    $region22: #{_classifier_forward.1} parent=1 // pred_check
      _
    $region23: #{_classifier_forward.1} parent=1 // pred_check_branch
      %54 = sbr.rel (0) target = $region25
    $region24: #{_classifier_forward.1} parent=1 // pred_region
      %56 = dma.done [#allocation7], 128
    $region25: #{_classifier_forward.1} parent=1 // pred_fallthru
      _
    // Predicated region
    $region26: #{_classifier_forward.1} parent=1 // pred_check
      _
    $region27: #{_classifier_forward.1} parent=1 // pred_check_branch
      %58 = sbr.rel (0) target = $region29
    $region28: #{_classifier_forward.1} parent=1 // pred_region
      %60 = dma.done [#allocation7], 1024
    $region29: #{_classifier_forward.1} parent=1 // pred_fallthru
      _
    %p61 = scmp.eq.s32.totalorder 0, 0
    // Predicated region
    $region30: #{_classifier_forward.1} parent=1 // pred_check
      %p62 = pneg %p61
    $region31: #{_classifier_forward.1} parent=1 // pred_check_branch
      %64 = sbr.rel (%p62) target = $region33
    $region32: #{_classifier_forward.1} parent=1 // pred_region
      %65 = vst [vmem:[#allocation2] sm:$0xff] 0.0
    $region33: #{_classifier_forward.1} parent=1 // pred_fallthru
      _
    %v66 = vld [vmem:[#allocation3] sm:$0xff]
    %v67 = vld [vmem:[#allocation6] sm:$0xff]
    %v68 = vsub.f32 %v66, %v67
    %v69 = vmul.f32 %v68, %v68
    %v70 = vld [vmem:[#allocation2] sm:$0xff]
    %v71 = vpack.c.bf16 %v69, %v69
    %v72 = vld [vmem:[#allocation8] sm:$0xf]
    %v73 = vld [vmem:[#allocation8 + $0x4] sm:$0xf]
    %v74 = vld [vmem:[#allocation8 + $0x8] sm:$0xf]
    %v75 = vld [vmem:[#allocation8 + $0xc] sm:$0xf]
    %v76 = vld [vmem:[#allocation8 + $0x10] sm:$0xf]
    %v77 = vld [vmem:[#allocation8 + $0x14] sm:$0xf]
    %v78 = vld [vmem:[#allocation8 + $0x18] sm:$0xf]
    %v79 = vld [vmem:[#allocation8 + $0x1c] sm:$0xf]
    %v80 = vld [vmem:[#allocation8 + $0x20] sm:$0xf]
    %v81 = vld [vmem:[#allocation8 + $0x24] sm:$0xf]
    %v82 = vld [vmem:[#allocation8 + $0x28] sm:$0xf]
    %v83 = vld [vmem:[#allocation8 + $0x2c] sm:$0xf]
    %v84 = vld [vmem:[#allocation8 + $0x30] sm:$0xf]
    %v85 = vld [vmem:[#allocation8 + $0x34] sm:$0xf]
    %v86 = vld [vmem:[#allocation8 + $0x38] sm:$0xf]
    %v87 = vld [vmem:[#allocation8 + $0x3c] sm:$0xf]
    %v104 = vunpack.c.l.b16 %v72
    %v105 = vunpack.c.l.b16 %v73
    %v106 = vunpack.c.l.b16 %v74
    %v107 = vunpack.c.l.b16 %v75
    %v108 = vunpack.c.l.b16 %v76
    %v109 = vunpack.c.l.b16 %v77
    %v110 = vunpack.c.l.b16 %v78
    %v111 = vunpack.c.l.b16 %v79
    %v112 = vunpack.c.l.b16 %v80
    %v113 = vunpack.c.l.b16 %v81
    %v114 = vunpack.c.l.b16 %v82
    %v115 = vunpack.c.l.b16 %v83
    %v116 = vunpack.c.l.b16 %v84
    %v117 = vunpack.c.l.b16 %v85
    %v118 = vunpack.c.l.b16 %v86
    %v119 = vunpack.c.l.b16 %v87
    %v120 = vpack.c.b16 %v105, %v104
    %v121 = vpack.c.b16 %v107, %v106
    %v122 = vpack.c.b16 %v109, %v108
    %v123 = vpack.c.b16 %v111, %v110
    %v124 = vpack.c.b16 %v113, %v112
    %v125 = vpack.c.b16 %v115, %v114
    %v126 = vpack.c.b16 %v117, %v116
    %v127 = vpack.c.b16 %v119, %v118
    %136 = vmatpush.bf16.msra.mxu0 %v127
    %137 = vmatpush.bf16.msra.mxu0 %v126
    %138 = vmatpush.bf16.msra.mxu0 %v125
    %139 = vmatpush.bf16.msra.mxu0 %v124
    %140 = vmatpush.bf16.msra.mxu0 %v123
    %141 = vmatpush.bf16.msra.mxu0 %v122
    %142 = vmatpush.bf16.msra.mxu0 %v121
    %143 = vmatpush.bf16.msra.mxu0 %v120
    %144 = vmatmul.bf16.gmra.mxu0 %v71
    %v145 = vpop.f32.mrf.mxu0
    %v146 = vadd.f32 0.0, %v145
    %v147 = vpop.f32.mrf.mxu0
    %148 = vdwg.mxu0
    %v149 = vadd.f32 %v70, %v146
    %150 = vst [vmem:[#allocation2] sm:$0xff] %v149
    // Predicated region
    $region34: #{_classifier_forward.1} parent=1 // pred_check
      %p151 = pneg %p61
    $region35: #{_classifier_forward.1} parent=1 // pred_check_branch
      %153 = sbr.rel (%p151) target = $region37
    $region36: #{_classifier_forward.1} parent=1 // pred_region
      %v154 = vld [vmem:[#allocation2] sm:$0xff]
      %v155 = vld [vmem:[%s3] sm:$0x1]
      %v157 = vperm.slane %v155, 0
      %v159 = vadd.f32 %v154, %v157
      %160 = vst [vmem:[#allocation9] sm:$0xff] %v159
    $region37: #{_classifier_forward.1} parent=1 // pred_fallthru
      _
    // Predicated region
    $region38: #{_classifier_forward.1} parent=1 // pred_check
      _
    $region39: #{_classifier_forward.1} parent=1 // pred_check_branch
      %162 = sbr.rel (0) target = $region41
    $region40: #{_classifier_forward.1} parent=1 // pred_region
      %164 = vsyncadd [#allocation5], 0
      %s166 = sshll.u32 [#allocation9], 4
      %s167 = int_to_ptr.vmem [resolvable:$true] %s166
      %s168 = sshll.u32 %s4, 4
      %s169 = int_to_ptr.hbm [resolvable:$true] %s168
      %171 = dma.vmem_to_hbm [thread:$0]  %s167, 128, %s169, [#allocation5]
    $region41: #{_classifier_forward.1} parent=1 // pred_fallthru
      _
    // Predicated region
    $region42: #{_classifier_forward.1} parent=1 // pred_check
      _
    $region43: #{_classifier_forward.1} parent=1 // pred_check_branch
      %173 = sbr.rel (0) target = $region45
    $region44: #{_classifier_forward.1} parent=1 // pred_region
      %175 = dma.done [#allocation5], 128
    $region45: #{_classifier_forward.1} parent=1 // pred_fallthru
      _
    %176 = vsyncpa [#allocation4], 1
    %177 = vsyncpa [#allocation7], 1
    %178 = vsyncpa [#allocation5], 1

</llo_original>
